<compile_context>
chip_gen: v5e
topology: v5e:2x2
jax: 0.10.0
libtpu: 0.0.40
codegen_flags: <defaults>
</compile_context>

<pallas_src>
import jax
import jax.numpy as jnp
from jax.experimental import pallas as pl
from jax.experimental.pallas import tpu as pltpu


# ---------------------------------------------------------------------------
# Stage 1 kernel: batch-invariant precompute (adjacency + per-node biases).
# ---------------------------------------------------------------------------
def _precompute_kernel(emb_ref, bg_ref, bu_ref, a_ref, biasg_ref, biasu_ref):
    emb = emb_ref[...]                                       # (N, D)

    # logits = E @ E^T  (contract the embed dim of both operands).
    logits = jax.lax.dot_general(
        emb, emb, (((1,), (1,)), ((), ())),
        preferred_element_type=jnp.float32)                  # (N, N)
    logits = jnp.maximum(logits, 0.0)

    # Row softmax (axis=1), max-subtracted, exact division.
    m = jnp.max(logits, axis=1, keepdims=True)
    e = jnp.exp(logits - m)
    s = jnp.sum(e, axis=1, keepdims=True)
    a_ref[...] = e / s

    biasg_ref[...] = jnp.dot(emb, bg_ref[...],
                             preferred_element_type=jnp.float32)
    biasu_ref[...] = jnp.dot(emb, bu_ref[...],
                             preferred_element_type=jnp.float32)


# ---------------------------------------------------------------------------
# Stage 2 kernel: per-batch-tile GRU cell built from two adaptive DGCN blocks.
# All feature slabs are node-major (N, bt, channels).
# ---------------------------------------------------------------------------
def _cell_kernel(a_ref, emb_ref, g_ref, s_ref, wg_ref, wux_ref, wus_ref,
                 bg_ref, bu_ref, h_ref):
    N, bt, C = g_ref.shape
    H = s_ref.shape[-1]
    Ci = C - H
    K = wg_ref.shape[0]
    D = emb_ref.shape[-1]

    A = a_ref[...]                                           # (N, N)
    emb3 = emb_ref[...][:, None, :]                          # (N, 1, D)
    g0 = g_ref[...]                                          # (N, bt, C) = [x, state]
    state = s_ref[...]                                       # (N, bt, H)

    def cheb_terms(x0):
        """Chebyshev recursion applied directly to the features along nodes.

        Each order is a single (N, N) @ (N, bt*c) MXU matmul (the compiler
        merges the trailing (bt, c) dims) — no broadcast copies of A and no
        batched tiny matmuls.
        """
        terms = [x0]                                          # T0 x = x
        terms.append(jnp.einsum('nm,mbc->nbc', A, x0,
                                preferred_element_type=jnp.float32))
        for _ in range(2, K):
            terms.append(
                2.0 * jnp.einsum('nm,mbc->nbc', A, terms[-1],
                                 preferred_element_type=jnp.float32)
                - terms[-2])
        return terms

    def adaptive_conv(pairs, bias, out_dim):
        """pairs: list of (feat (N, bt, c), w (c, D*out_dim)).

        out[n,b,o] = bias[n,o]
                   + sum_d emb[n,d] * (sum_pairs feat @ w)[n,b,d*out_dim+o]
        The matmuls are lane-dense (D*out_dim >= 256 lanes); the D-reduction is
        a short VPU loop over static lane slices.
        """
        t = None
        for feat, w in pairs:
            contrib = jnp.einsum('nbc,cf->nbf', feat, w,
                                 preferred_element_type=jnp.float32)
            t = contrib if t is None else t + contrib
        acc = None
        for d in range(D):
            term = emb3[:, :, d:d + 1] * t[:, :, d * out_dim:(d + 1) * out_dim]
            acc = term if acc is None else acc + term
        return acc + bias[:, None, :]

    # ---- Gate DGCN on [x, state] (concatenated in the wrapper).
    G = cheb_terms(g0)                                       # K x (N, bt, C)
    z_r = jax.nn.sigmoid(
        adaptive_conv([(G[k], wg_ref[k]) for k in range(K)],
                      bg_ref[...], 2 * H))                   # (N, bt, 2H)
    z = z_r[:, :, :H]
    r = z_r[:, :, H:]

    # ---- Update DGCN on [x, z*state].  T_k acts column-wise, so the x-part
    # of the Chebyshev stack is reused from the gate branch; only T_k(z*state)
    # is recomputed.  The channel split avoids any in-kernel lane concat.
    ZS = cheb_terms(z * state)                               # K x (N, bt, H)
    pairs_u = ([(G[k][:, :, :Ci], wux_ref[k]) for k in range(K)]
               + [(ZS[k], wus_ref[k]) for k in range(K)])
    hc = jnp.tanh(adaptive_conv(pairs_u, bu_ref[...], H))    # (N, bt, H)

    h_ref[...] = r * state + (1.0 - r) * hc


# ---------------------------------------------------------------------------
# Wrapper
# ---------------------------------------------------------------------------
def embed_dgcn_forward(x, state, node_embeddings,
                       w_gate, b_gate, w_update, b_update, *, cheb_k,
                       batch_tile=None):
    B, N, Ci = x.shape
    H = w_update.shape[-1]
    D = node_embeddings.shape[1]
    C = Ci + H
    if cheb_k < 2:
        raise ValueError("cheb_k must be >= 2 (support stack is [I, A, ...]).")
    assert w_gate.shape == (D, cheb_k, C, 2 * H)
    assert w_update.shape == (D, cheb_k, C, H)
    assert state.shape == (B, N, H)

    x = x.astype(jnp.float32)
    state = state.astype(jnp.float32)
    node_embeddings = node_embeddings.astype(jnp.float32)

    # ---- Stage 1: batch-invariant adjacency + per-node biases (one call).
    a_mat, bias_g, bias_u = pl.pallas_call(
        _precompute_kernel,
        out_shape=(jax.ShapeDtypeStruct((N, N), jnp.float32),
                   jax.ShapeDtypeStruct((N, 2 * H), jnp.float32),
                   jax.ShapeDtypeStruct((N, H), jnp.float32)),
        grid=(1,),
        in_specs=[pl.BlockSpec((N, D), lambda i: (0, 0)),
                  pl.BlockSpec((D, 2 * H), lambda i: (0, 0)),
                  pl.BlockSpec((D, H), lambda i: (0, 0))],
        out_specs=(pl.BlockSpec((N, N), lambda i: (0, 0)),
                   pl.BlockSpec((N, 2 * H), lambda i: (0, 0)),
                   pl.BlockSpec((N, H), lambda i: (0, 0))),
    )(node_embeddings, b_gate, b_update)

    # ---- Static layout work done once in the wrapper (XLA, outside kernel).
    # Stack the D weight matrices along the output/lane axis -> (K, C, D*O);
    # the update weights are additionally split into x / state channel blocks.
    wg_r = jnp.transpose(w_gate, (1, 2, 0, 3)).reshape(cheb_k, C, D * 2 * H)
    wu_r = jnp.transpose(w_update, (1, 2, 0, 3)).reshape(cheb_k, C, D * H)
    wu_x = wu_r[:, :Ci, :]                                   # (K, Ci, D*H)
    wu_s = wu_r[:, Ci:, :]                                   # (K, H,  D*H)

    # Gate input [x, state] is concatenated once here (never in-kernel), and
    # both tensors are transposed to node-major (N, B, .) so the Chebyshev
    # step is a single wide 2D matmul per order.
    gate_in_t = jnp.transpose(jnp.concatenate([x, state], axis=-1), (1, 0, 2))
    state_t = jnp.transpose(state, (1, 0, 2))

    # ---- Batch tiling: bt must be a multiple of 8 or cover the whole (padded)
    # batch so the tiled second-to-last block dim obeys the (8,128) rule.
    if batch_tile is None:
        bt = B if B <= 8 else 8
    else:
        bt = batch_tile
    b_pad = -(-B // bt) * bt
    assert bt % 8 == 0 or bt == b_pad, \
        "batch_tile must be a multiple of 8 or cover the whole batch"
    if b_pad != B:
        pad = ((0, 0), (0, b_pad - B), (0, 0))
        gate_in_t = jnp.pad(gate_in_t, pad)
        state_t = jnp.pad(state_t, pad)
    grid = (b_pad // bt,)

    h_t = pl.pallas_call(
        _cell_kernel,
        out_shape=jax.ShapeDtypeStruct((N, b_pad, H), jnp.float32),
        grid_spec=pltpu.PrefetchScalarGridSpec(
            num_scalar_prefetch=0,
            grid=grid,
            in_specs=[
                pl.BlockSpec((N, N), lambda b: (0, 0)),                    # A
                pl.BlockSpec((N, D), lambda b: (0, 0)),                    # E
                pl.BlockSpec((N, bt, C), lambda b: (0, b, 0)),             # [x, state]
                pl.BlockSpec((N, bt, H), lambda b: (0, b, 0)),             # state
                pl.BlockSpec((cheb_k, C, D * 2 * H), lambda b: (0, 0, 0)),  # W gate
                pl.BlockSpec((cheb_k, Ci, D * H), lambda b: (0, 0, 0)),     # W upd (x)
                pl.BlockSpec((cheb_k, H, D * H), lambda b: (0, 0, 0)),      # W upd (s)
                pl.BlockSpec((N, 2 * H), lambda b: (0, 0)),                # bias_g
                pl.BlockSpec((N, H), lambda b: (0, 0)),                    # bias_u
            ],
            out_specs=pl.BlockSpec((N, bt, H), lambda b: (0, b, 0)),
        ),
        compiler_params=pltpu.CompilerParams(
            dimension_semantics=("parallel",),
            vmem_limit_bytes=48 * 1024 * 1024,
        ),
    )(a_mat, node_embeddings, gate_in_t, state_t, wg_r, wu_x, wu_s,
      bias_g, bias_u)

    # Drop batch padding and return in the module's (B, N, H) layout.
    return jnp.transpose(h_t[:, :B, :], (1, 0, 2))


# ---------------------------------------------------------------------------
# Pure-JAX reference (mirrors the PyTorch forward exactly) for verification.
# ---------------------------------------------------------------------------
def _dgcn_ref(x, emb, w_pool, b_pool, cheb_k):
    N = emb.shape[0]
    supports = jax.nn.softmax(jnp.maximum(emb @ emb.T, 0.0), axis=1)
    support_set = [jnp.eye(N, dtype=jnp.float32), supports]
    for _ in range(2, cheb_k):
        support_set.append(2.0 * supports @ support_set[-1] - support_set[-2])
    supports = jnp.stack(support_set, axis=0)
    weights = jnp.einsum('nd,dkio->nkio', emb, w_pool)
    bias = emb @ b_pool
    x_g = jnp.einsum('knm,bmc->bknc', supports, x)
    x_g = jnp.transpose(x_g, (0, 2, 1, 3))
    return jnp.einsum('bnki,nkio->bno', x_g, weights) + bias


def embed_dgcn_ref(x, state, emb, w_gate, b_gate, w_update, b_update, cheb_k):
    H = w_update.shape[-1]
    inp = jnp.concatenate([x, state], axis=-1)
    z_r = jax.nn.sigmoid(_dgcn_ref(inp, emb, w_gate, b_gate, cheb_k))
    z, r = z_r[..., :H], z_r[..., H:]
    cand = jnp.concatenate([x, z * state], axis=-1)
    hc = jnp.tanh(_dgcn_ref(cand, emb, w_update, b_update, cheb_k))
    return r * state + (1.0 - r) * hc


# ---------------------------------------------------------------------------
if __name__ == "__main__":
    # Small, module-consistent shapes.
    B = 2          # batch
    N = 16         # node_num
    DIM_IN = 4     # input channels
    DIM_OUT = 32   # hidden_dim
    CHEB_K = 3
    EMBED = 8      # embed_dim

    key = jax.random.PRNGKey(0)
    k_x, k_s, k_e, k_wg, k_bg, k_wu, k_bu = jax.random.split(key, 7)

    x = jax.random.normal(k_x, (B, N, DIM_IN), jnp.float32)
    state = jax.random.normal(k_s, (B, N, DIM_OUT), jnp.float32)
    node_emb = jax.random.normal(k_e, (N, EMBED), jnp.float32)

    cin = DIM_IN + DIM_OUT
    # Deterministic synthetic parameters (module __init__ gives only shapes).
    w_gate = 0.1 * jax.random.normal(k_wg, (EMBED, CHEB_K, cin, 2 * DIM_OUT),
                                     jnp.float32)
    b_gate = 0.1 * jax.random.normal(k_bg, (EMBED, 2 * DIM_OUT), jnp.float32)
    w_update = 0.1 * jax.random.normal(k_wu, (EMBED, CHEB_K, cin, DIM_OUT),
                                       jnp.float32)
    b_update = 0.1 * jax.random.normal(k_bu, (EMBED, DIM_OUT), jnp.float32)

    h = embed_dgcn_forward(x, state, node_emb,
                           w_gate, b_gate, w_update, b_update,
                           cheb_k=CHEB_K)
    h = jax.block_until_ready(h)

    h_ref = embed_dgcn_ref(x, state, node_emb,
                           w_gate, b_gate, w_update, b_update, CHEB_K)
    assert h.shape == (B, N, DIM_OUT)
    assert jnp.allclose(h, h_ref, rtol=1e-3, atol=1e-3), "mismatch vs reference"

    print("KERNEL_OK")
</pallas_src>

<mosaic_0001>
module attributes {stable_mosaic.version = 11 : i64} {
  func.func @_precompute_kernel(%arg0: i32, %arg1: memref<16x8xf32, #tpu.memory_space<vmem>>, %arg2: memref<8x64xf32, #tpu.memory_space<vmem>>, %arg3: memref<8x32xf32, #tpu.memory_space<vmem>>, %arg4: memref<16x16xf32, #tpu.memory_space<vmem>>, %arg5: memref<16x64xf32, #tpu.memory_space<vmem>>, %arg6: memref<16x32xf32, #tpu.memory_space<vmem>>) attributes {dimension_semantics = [#tpu.dimension_semantics<arbitrary>], iteration_bounds = array<i64: 1>, scalar_prefetch = 0 : i64, scratch_operands = 0 : i64, tpu.core_type = #tpu.core_type<tc>, window_params = [{pipeline_mode = #tpu.pipeline_mode<synchronous>, transform_indices = @transform_0, window_bounds = array<i64: 16, 8>}, {pipeline_mode = #tpu.pipeline_mode<synchronous>, transform_indices = @transform_1, window_bounds = array<i64: 8, 64>}, {pipeline_mode = #tpu.pipeline_mode<synchronous>, transform_indices = @transform_2, window_bounds = array<i64: 8, 32>}, {pipeline_mode = #tpu.pipeline_mode<synchronous>, transform_indices = @transform_3, window_bounds = array<i64: 16, 16>}, {pipeline_mode = #tpu.pipeline_mode<synchronous>, transform_indices = @transform_4, window_bounds = array<i64: 16, 64>}, {pipeline_mode = #tpu.pipeline_mode<synchronous>, transform_indices = @transform_5, window_bounds = array<i64: 16, 32>}]} {
    %c0 = arith.constant 0 : index
    %c0_0 = arith.constant 0 : index
    %0 = vector.load %arg1[%c0, %c0_0] : memref<16x8xf32, #tpu.memory_space<vmem>>, vector<16x8xf32>
    %cst = arith.constant dense<0.000000e+00> : vector<16x16xf32>
    %1 = tpu.matmul %0, %0, %cst {dimension_numbers = #tpu.dot_dimension_numbers<[1], [1], [0], [0], [0, 0, 1, 0], [], []>} : vector<16x8xf32>, vector<16x8xf32>, vector<16x16xf32> -> vector<16x16xf32>
    %cst_1 = arith.constant 0.000000e+00 : f32
    %2 = vector.broadcast %cst_1 : f32 to vector<16x16xf32>
    %3 = arith.maximumf %1, %2 : vector<16x16xf32>
    %cst_2 = arith.constant dense<0xFF800000> : vector<16xf32>
    %4 = vector.multi_reduction <maximumf>, %3, %cst_2 [1] : vector<16x16xf32> to vector<16xf32>
    %5 = vector.shape_cast %4 : vector<16xf32> to vector<16x1xf32>
    %6 = vector.broadcast %5 : vector<16x1xf32> to vector<16x16xf32>
    %7 = arith.subf %3, %6 : vector<16x16xf32>
    %8 = math.exp %7 : vector<16x16xf32>
    %cst_3 = arith.constant dense<0.000000e+00> : vector<16xf32>
    %9 = vector.multi_reduction <add>, %8, %cst_3 [1] : vector<16x16xf32> to vector<16xf32>
    %10 = vector.shape_cast %9 : vector<16xf32> to vector<16x1xf32>
    %11 = vector.broadcast %10 : vector<16x1xf32> to vector<16x16xf32>
    %12 = arith.divf %8, %11 : vector<16x16xf32>
    %c0_4 = arith.constant 0 : index
    %c0_5 = arith.constant 0 : index
    %13 = vector.load %arg4[%c0_4, %c0_5] : memref<16x16xf32, #tpu.memory_space<vmem>>, vector<16x16xf32>
    tpu.vector_store %arg4[%c0_4, %c0_5], %12 {strides = array<i32>} : memref<16x16xf32, #tpu.memory_space<vmem>>, vector<16x16xf32>,
    %c0_6 = arith.constant 0 : index
    %c0_7 = arith.constant 0 : index
    %14 = vector.load %arg2[%c0_6, %c0_7] : memref<8x64xf32, #tpu.memory_space<vmem>>, vector<8x64xf32>
    %cst_8 = arith.constant dense<0.000000e+00> : vector<16x64xf32>
    %15 = tpu.matmul %0, %14, %cst_8 {dimension_numbers = #tpu.dot_dimension_numbers<[1], [0], [0], [1], [0, 0, 1, 1], [], []>} : vector<16x8xf32>, vector<8x64xf32>, vector<16x64xf32> -> vector<16x64xf32>
    %c0_9 = arith.constant 0 : index
    %c0_10 = arith.constant 0 : index
    %16 = vector.load %arg5[%c0_9, %c0_10] : memref<16x64xf32, #tpu.memory_space<vmem>>, vector<16x64xf32>
    tpu.vector_store %arg5[%c0_9, %c0_10], %15 {strides = array<i32>} : memref<16x64xf32, #tpu.memory_space<vmem>>, vector<16x64xf32>,
    %c0_11 = arith.constant 0 : index
    %c0_12 = arith.constant 0 : index
    %17 = vector.load %arg3[%c0_11, %c0_12] : memref<8x32xf32, #tpu.memory_space<vmem>>, vector<8x32xf32>
    %cst_13 = arith.constant dense<0.000000e+00> : vector<16x32xf32>
    %18 = tpu.matmul %0, %17, %cst_13 {dimension_numbers = #tpu.dot_dimension_numbers<[1], [0], [0], [1], [0, 0, 1, 1], [], []>} : vector<16x8xf32>, vector<8x32xf32>, vector<16x32xf32> -> vector<16x32xf32>
    %c0_14 = arith.constant 0 : index
    %c0_15 = arith.constant 0 : index
    %19 = vector.load %arg6[%c0_14, %c0_15] : memref<16x32xf32, #tpu.memory_space<vmem>>, vector<16x32xf32>
    tpu.vector_store %arg6[%c0_14, %c0_15], %18 {strides = array<i32>} : memref<16x32xf32, #tpu.memory_space<vmem>>, vector<16x32xf32>,
    return
  }
  func.func @transform_0(%arg0: i32) -> (i32, i32) {
    %c0_i32 = arith.constant 0 : i32
    %c0_i32_0 = arith.constant 0 : i32
    %c0_i32_1 = arith.constant 0 : i32
    return %c0_i32, %c0_i32_0 : i32, i32
  }
  func.func @transform_1(%arg0: i32) -> (i32, i32) {
    %c0_i32 = arith.constant 0 : i32
    %c0_i32_0 = arith.constant 0 : i32
    %c0_i32_1 = arith.constant 0 : i32
    return %c0_i32, %c0_i32_0 : i32, i32
  }
  func.func @transform_2(%arg0: i32) -> (i32, i32) {
    %c0_i32 = arith.constant 0 : i32
    %c0_i32_0 = arith.constant 0 : i32
    %c0_i32_1 = arith.constant 0 : i32
    return %c0_i32, %c0_i32_0 : i32, i32
  }
  func.func @transform_3(%arg0: i32) -> (i32, i32) {
    %c0_i32 = arith.constant 0 : i32
    %c0_i32_0 = arith.constant 0 : i32
    %c0_i32_1 = arith.constant 0 : i32
    return %c0_i32, %c0_i32_0 : i32, i32
  }
  func.func @transform_4(%arg0: i32) -> (i32, i32) {
    %c0_i32 = arith.constant 0 : i32
    %c0_i32_0 = arith.constant 0 : i32
    %c0_i32_1 = arith.constant 0 : i32
    return %c0_i32, %c0_i32_0 : i32, i32
  }
  func.func @transform_5(%arg0: i32) -> (i32, i32) {
    %c0_i32 = arith.constant 0 : i32
    %c0_i32_0 = arith.constant 0 : i32
    %c0_i32_1 = arith.constant 0 : i32
    return %c0_i32, %c0_i32_0 : i32, i32
  }
}

</mosaic_0001>

<llo_original>
// kernel: tpu_custom_call.1
$region0: #{tpu_custom_call.1}
  #allocation0 [shape = 'u32[]', space=smem, size = 0x4, offset = 0x4, fixed_abs, tag = 'smem constant byte address 0x4 - core index']
  #allocation1 [shape = 'u32[72,128]{1,0:T(1,128)}', space=vmem, size = 0x9000, scoped, tag = 'internal scratch']
  %s0 = inlined_call_operand.vmem [shape: f32[16,8], index: 0, kind: input, shape index: {}]
  %s1 = inlined_call_operand.vmem [shape: f32[8,64], index: 1, kind: input, shape index: {}]
  %s2 = inlined_call_operand.vmem [shape: f32[8,32], index: 2, kind: input, shape index: {}]
  %s3 = inlined_call_operand.hbm [shape: f32[16,16], index: 3, kind: output, shape index: {0}]
  %s4 = inlined_call_operand.hbm [shape: f32[16,64], index: 4, kind: output, shape index: {1}]
  %s5 = inlined_call_operand.hbm [shape: f32[16,32], index: 5, kind: output, shape index: {2}]
  %6 = xla_tuple %s3, %s4, %s5
  %s7 = sld [smem:[#allocation0]]
  $region38: #{tpu_custom_call.1} parent=0
    _
  %s9 = ssub.s32 1, %s7
  %s10 = scalar_select 0, %s9, %s7
  $region1: #{tpu_custom_call.1} parent=0
    #allocation2 [shape = 'u8[8192]{0}', space=vmem, size = 0x2000, scoped, tag = 'output window, operand 0, single buffered']
    #allocation3 [shape = 's32[1]{0}', space=sflag, size = 0x4, scoped, tag = 'scoped memory for tpu_custom_call.1']
    #allocation4 [shape = 'u8[8192]{0}', space=vmem, size = 0x2000, scoped, tag = 'output window, operand 1, single buffered']
    #allocation5 [shape = 's32[1]{0}', space=sflag, size = 0x4, scoped, tag = 'scoped memory for tpu_custom_call.1']
    #allocation6 [shape = 'u8[8192]{0}', space=vmem, size = 0x2000, scoped, tag = 'output window, operand 2, single buffered']
    %11 = vsyncpa [#allocation3], 0
    %12 = vsyncpa [#allocation5], 0
    // Predicated region
    $region2: #{tpu_custom_call.1} parent=1 // pred_check
      _
    $region3: #{tpu_custom_call.1} parent=1 // pred_check_branch
      %14 = sbr.rel (0) target = $region5
    $region4: #{tpu_custom_call.1} parent=1 // pred_region
      _
    $region5: #{tpu_custom_call.1} parent=1 // pred_fallthru
      _
    // Predicated region
    $region6: #{tpu_custom_call.1} parent=1 // pred_check
      _
    $region7: #{tpu_custom_call.1} parent=1 // pred_check_branch
      %16 = sbr.rel (0) target = $region9
    $region8: #{tpu_custom_call.1} parent=1 // pred_region
      _
    $region9: #{tpu_custom_call.1} parent=1 // pred_fallthru
      _
    // Predicated region
    $region10: #{tpu_custom_call.1} parent=1 // pred_check
      _
    $region11: #{tpu_custom_call.1} parent=1 // pred_check_branch
      %18 = sbr.rel (0) target = $region13
    $region12: #{tpu_custom_call.1} parent=1 // pred_region
      _
    $region13: #{tpu_custom_call.1} parent=1 // pred_fallthru
      _
    %v19 = vld [vmem:[%s0] sm:$0xff]
    %v20 = vld [vmem:[%s0 + $0x8] sm:$0xff]
    %vm21 = vcmask 64512
    %v23 = vsel %vm21, %v19, 0
    %v26 = vsel %vm21, %v20, 0
    %28 = vmatpush.xpose.msra.mxu0 0.0
    %29 = vmatpush.xpose.msra.mxu0 0.0
    %30 = vmatpush.xpose.msra.mxu0 0.0
    %31 = vmatpush.xpose.msra.mxu0 0.0
    %32 = vmatpush.xpose.msra.mxu0 0.0
    %33 = vmatpush.xpose.msra.mxu0 0.0
    %34 = vmatpush.xpose.msra.mxu0 0.0
    %35 = vmatpush.xpose.msra.mxu0 0.0
    %36 = vmatpush.xpose.msra.mxu0 0.0
    %37 = vmatpush.xpose.msra.mxu0 0.0
    %38 = vmatpush.xpose.msra.mxu0 0.0
    %39 = vmatpush.xpose.msra.mxu0 0.0
    %40 = vmatpush.xpose.msra.mxu0 0.0
    %41 = vmatpush.xpose.msra.mxu0 0.0
    %42 = vmatpush.xpose.msra.mxu0 %v26
    %43 = vmatpush.xpose.msra.mxu0 %v23
    %44 = vmatmul.f32.gmra.mxu0 %v23
    %v45 = vpop.f32.mrf.mxu0
    %v46 = vadd.f32 0.0, %v45
    %47 = vmatmul.f32.gmra.mxu0 %v26
    %v48 = vpop.f32.mrf.mxu0
    %v49 = vadd.f32 0.0, %v48
    %50 = vdwg.mxu0
    %v51 = vmax.f32 %v46, 0.0
    %v52 = vmax.f32 %v49, 0.0
    %vm53 = vcmask 130048
    %v54 = vsel %vm53, %v51, -inf
    %55 = vmax.xlane.f32.xlu0 %v54
    %v56 = vpop.xlane.xlu0 %55
    %v57 = vsel %vm53, %v52, -inf
    %58 = vmax.xlane.f32.xlu0 %v57
    %v59 = vpop.xlane.xlu0 %58
    %v60 = vsub.f32 %v51, %v56
    %v61 = vsub.f32 %v52, %v59
    %v62 = vmul.f32 %v60, 1.442695
    %v63 = vpow.pop %v62
    %v64 = vmul.f32 %v61, 1.442695
    %v65 = vpow.pop %v64
    %v66 = vsel %vm53, %v63, 0.0
    %67 = vadd.xlane.f32.xlu0 %v66
    %v68 = vpop.xlane.xlu0 %67
    %v69 = vsel %vm53, %v65, 0.0
    %70 = vadd.xlane.f32.xlu0 %v69
    %v71 = vpop.xlane.xlu0 %70
    %v72 = vrcp.pop %v68
    %v73 = vmul.f32 %v68, %v72
    %v74 = vsub.f32 1.0, %v73
    %v75 = vmul.f32 %v72, %v74
    %v76 = vadd.f32 %v72, %v75
    %vm77 = vweird.f32 %v68
    %vm78 = vweird.f32 %v72
    %vm79 = vmor %vm77, %vm78
    %v80 = vsel %vm79, %v72, %v76
    %v81 = vand.u32 2147483647, %v68
    %vm82 = vcmp.eq.f32.partialorder %v81, 8.507059e+37
    %v83 = vand.u32 %v68, 2147483648
    %v84 = vor.u32 1.1754944e-38, %v83
    %v85 = vsel %vm82, %v84, %v80
    %v86 = vmul.f32 %v63, %v85
    %v87 = vrcp.pop %v71
    %v88 = vmul.f32 %v71, %v87
    %v89 = vsub.f32 1.0, %v88
    %v90 = vmul.f32 %v87, %v89
    %v91 = vadd.f32 %v87, %v90
    %vm92 = vweird.f32 %v71
    %vm93 = vweird.f32 %v87
    %vm94 = vmor %vm92, %vm93
    %v95 = vsel %vm94, %v87, %v91
    %v96 = vand.u32 2147483647, %v71
    %vm97 = vcmp.eq.f32.partialorder %v96, 8.507059e+37
    %v98 = vand.u32 %v71, 2147483648
    %v99 = vor.u32 1.1754944e-38, %v98
    %v100 = vsel %vm97, %v99, %v95
    %v101 = vmul.f32 %v65, %v100
    %102 = vst.msk [vmem:[#allocation2] sm:$0xff] %vm53, %v86
    %103 = vst.msk [vmem:[#allocation2 + $0x8] sm:$0xff] %vm53, %v101
    %v104 = vld [vmem:[%s1] sm:$0xff]
    %105 = vmatpush.msra.mxu0 0.0
    %106 = vmatpush.msra.mxu0 0.0
    %107 = vmatpush.msra.mxu0 0.0
    %108 = vmatpush.msra.mxu0 0.0
    %109 = vmatpush.msra.mxu0 0.0
    %110 = vmatpush.msra.mxu0 0.0
    %111 = vmatpush.msra.mxu0 0.0
    %112 = vmatpush.msra.mxu0 0.0
    %113 = vmatpush.msra.mxu0 0.0
    %114 = vmatpush.msra.mxu0 0.0
    %115 = vmatpush.msra.mxu0 0.0
    %116 = vmatpush.msra.mxu0 0.0
    %117 = vmatpush.msra.mxu0 0.0
    %118 = vmatpush.msra.mxu0 0.0
    %119 = vmatpush.msra.mxu0 0.0
    %120 = vmatpush.msra.mxu0 %v104
    %121 = vmatmul.f32.gmra.mxu0 %v23
    %v122 = vpop.f32.mrf.mxu0
    %v123 = vadd.f32 0.0, %v122
    %124 = vmatmul.f32.gmra.mxu0 %v26
    %v125 = vpop.f32.mrf.mxu0
    %v126 = vadd.f32 0.0, %v125
    %127 = vdwg.mxu0
    %vm128 = vcmask 523264
    %129 = vst.msk [vmem:[#allocation4] sm:$0xff] %vm128, %v123
    %130 = vst.msk [vmem:[#allocation4 + $0x8] sm:$0xff] %vm128, %v126
    %v131 = vld [vmem:[%s2] sm:$0xff]
    %132 = vmatpush.msra.mxu0 0.0
    %133 = vmatpush.msra.mxu0 0.0
    %134 = vmatpush.msra.mxu0 0.0
    %135 = vmatpush.msra.mxu0 0.0
    %136 = vmatpush.msra.mxu0 0.0
    %137 = vmatpush.msra.mxu0 0.0
    %138 = vmatpush.msra.mxu0 0.0
    %139 = vmatpush.msra.mxu0 0.0
    %140 = vmatpush.msra.mxu0 0.0
    %141 = vmatpush.msra.mxu0 0.0
    %142 = vmatpush.msra.mxu0 0.0
    %143 = vmatpush.msra.mxu0 0.0
    %144 = vmatpush.msra.mxu0 0.0
    %145 = vmatpush.msra.mxu0 0.0
    %146 = vmatpush.msra.mxu0 0.0
    %147 = vmatpush.msra.mxu0 %v131
    %148 = vmatmul.f32.gmra.mxu0 %v23
    %v149 = vpop.f32.mrf.mxu0
    %v150 = vadd.f32 0.0, %v149
    %151 = vmatmul.f32.gmra.mxu0 %v26
    %v152 = vpop.f32.mrf.mxu0
    %v153 = vadd.f32 0.0, %v152
    %154 = vdwg.mxu0
    %vm155 = vcmask 261120
    %156 = vst.msk [vmem:[#allocation6] sm:$0xff] %vm155, %v150
    %157 = vst.msk [vmem:[#allocation6 + $0x8] sm:$0xff] %vm155, %v153
    // Predicated region
    $region14: #{tpu_custom_call.1} parent=1 // pred_check
      _
    $region15: #{tpu_custom_call.1} parent=1 // pred_check_branch
      %159 = sbr.rel (0) target = $region17
    $region16: #{tpu_custom_call.1} parent=1 // pred_region
      %161 = vsyncadd [#allocation3], 0
      %s162 = sshll.u32 [#allocation2], 4
      %s163 = int_to_ptr.vmem [resolvable:$true] %s162
      %s164 = sshll.u32 %s3, 4
      %s165 = int_to_ptr.hbm [resolvable:$true] %s164
      %170 = dma.vmem_to_hbm [thread:$0]  %s163, 256, %s165, [#allocation3], 128, 128, 8
    $region17: #{tpu_custom_call.1} parent=1 // pred_fallthru
      _
    // Predicated region
    $region18: #{tpu_custom_call.1} parent=1 // pred_check
      _
    $region19: #{tpu_custom_call.1} parent=1 // pred_check_branch
      %172 = sbr.rel (0) target = $region21
    $region20: #{tpu_custom_call.1} parent=1 // pred_region
      %174 = vsyncadd [#allocation5], 0
      %s175 = sshll.u32 [#allocation4], 4
      %s176 = int_to_ptr.vmem [resolvable:$true] %s175
      %s177 = sshll.u32 %s4, 4
      %s178 = int_to_ptr.hbm [resolvable:$true] %s177
      %183 = dma.vmem_to_hbm [thread:$0]  %s176, 256, %s178, [#allocation5], 128, 128, 8
    $region21: #{tpu_custom_call.1} parent=1 // pred_fallthru
      _
    // Predicated region
    $region22: #{tpu_custom_call.1} parent=1 // pred_check
      _
    $region23: #{tpu_custom_call.1} parent=1 // pred_check_branch
      %185 = sbr.rel (0) target = $region25
    $region24: #{tpu_custom_call.1} parent=1 // pred_region
      %187 = vsyncadd [#allocation5], 0
      %s188 = sshll.u32 [#allocation6], 4
      %s189 = int_to_ptr.vmem [resolvable:$true] %s188
      %s190 = sshll.u32 %s5, 4
      %s191 = int_to_ptr.hbm [resolvable:$true] %s190
      %196 = dma.vmem_to_hbm [thread:$0]  %s189, 256, %s191, [#allocation5], 128, 128, 8
    $region25: #{tpu_custom_call.1} parent=1 // pred_fallthru
      _
    // Predicated region
    $region26: #{tpu_custom_call.1} parent=1 // pred_check
      _
    $region27: #{tpu_custom_call.1} parent=1 // pred_check_branch
      %198 = sbr.rel (0) target = $region29
    $region28: #{tpu_custom_call.1} parent=1 // pred_region
      %200 = dma.done [#allocation3], 256
    $region29: #{tpu_custom_call.1} parent=1 // pred_fallthru
      _
    // Predicated region
    $region30: #{tpu_custom_call.1} parent=1 // pred_check
      _
    $region31: #{tpu_custom_call.1} parent=1 // pred_check_branch
      %202 = sbr.rel (0) target = $region33
    $region32: #{tpu_custom_call.1} parent=1 // pred_region
      %204 = dma.done [#allocation5], 256
    $region33: #{tpu_custom_call.1} parent=1 // pred_fallthru
      _
    // Predicated region
    $region34: #{tpu_custom_call.1} parent=1 // pred_check
      _
    $region35: #{tpu_custom_call.1} parent=1 // pred_check_branch
      %206 = sbr.rel (0) target = $region37
    $region36: #{tpu_custom_call.1} parent=1 // pred_region
      %208 = dma.done [#allocation5], 256
    $region37: #{tpu_custom_call.1} parent=1 // pred_fallthru
      _
    %209 = vsyncpa [#allocation3], 1
    %210 = vsyncpa [#allocation5], 1

</llo_original>
